<compile_context>
chip_gen: v5e
topology: v5e:2x2
jax: 0.10.0
libtpu: 0.0.40
codegen_flags: <defaults>
</compile_context>

<pallas_src>
import functools

import jax
import jax.numpy as jnp
from jax.experimental import pallas as pl
from jax.experimental.pallas import tpu as pltpu


def _round_up(x, m):
    return ((x + m - 1) // m) * m


def _groupkan_kernel(x_ref, coef_ref, wt_ref, bias_ref, o_ref, act_ref, *, act_dtype):
    """Grid = (n_m, n_cout); Cout axis is inner and sequential ("arbitrary").

    The rational activation is evaluated once per M tile (j == 0) and cached as bf16
    in the persistent VMEM scratch `act_ref`; every Cout tile reuses it for the MXU.
    """
    j = pl.program_id(1)

    @pl.when(j == 0)
    def _():
        x = x_ref[...]                                  # (tm, Cin)
        if x.dtype != act_dtype:
            x = x.astype(act_dtype)
        coef = coef_ref[...]                            # (16, Cin) merged coefficient table
        if coef.dtype != act_dtype:
            coef = coef.astype(act_dtype)

        # Numerator P(x) = a0 + a1*x + ... + a5*x^5 (rows 0..5), Horner on the VPU
        # (coefficient rows broadcast over the tm sublanes).
        p = coef[5:6, :]
        for k in (4, 3, 2, 1, 0):
            p = p * x + coef[k:k + 1, :]                # (tm, Cin)

        # Denominator Q(x) = 1 + |b1*x + b2*x^2 + b3*x^3 + b4*x^4| (rows 8..11), Horner.
        s = coef[11:12, :]
        for k in (10, 9, 8):
            s = s * x + coef[k:k + 1, :]
        s = s * x
        q = 1.0 + jnp.abs(s)

        # q >= 1 by construction -> approximate EUP reciprocal is safe; frees VALU slots.
        act = p * pl.reciprocal(q, approx=True)         # (tm, Cin); dropout = identity
        act_ref[...] = act.astype(act_ref.dtype)        # cache as bf16 for the MXU

    # bf16 operands into the MXU, f32 accumulation; bias broadcast-add in the epilogue.
    y = jnp.dot(act_ref[...], wt_ref[...], preferred_element_type=jnp.float32)  # (tm, tn)
    y = y + bias_ref[...]                               # (1, tn) broadcast
    o_ref[...] = y.astype(o_ref.dtype)


def prepare_groupkan_params(num_g, den_g, weight, bias, *, tn):
    """One-time parameter preprocessing (keep OUT of the per-forward path)."""
    cout, cin = weight.shape
    G = num_g.shape[0]
    assert cin % G == 0, "in_features must be divisible by num_groups"
    gs = cin // G
    cout_pad = _round_up(cout, tn)

    num_pc = jnp.repeat(num_g.astype(jnp.float32), gs, axis=0).T     # (6, Cin)
    den_pc = jnp.repeat(den_g.astype(jnp.float32), gs, axis=0).T     # (4, Cin)
    # Single merged (16, Cin) coefficient table: rows 0..5 numerator, rows 8..11
    # denominator (sublane-aligned).  One input stream instead of two; the 6-/4-row
    # blocks would each have padded to 8 sublanes anyway.
    coef = jnp.zeros((16, cin), jnp.float32)
    coef = coef.at[0:6, :].set(num_pc)
    coef = coef.at[8:12, :].set(den_pc)

    w_t = jnp.pad(weight.T.astype(jnp.bfloat16),
                  ((0, 0), (0, cout_pad - cout)))                    # (Cin, Cout_pad) bf16
    bias2d = jnp.pad(bias.astype(jnp.float32),
                     (0, cout_pad - cout)).reshape(1, cout_pad)      # (1, Cout_pad) f32
    return coef, w_t, bias2d


def pick_tiles(m_rows, cin, cout, *, x_itemsize=4):
    """tm / tn selection (outside jit).  tn is lane-dense (multiple of 128); when the
    whole bf16 weight fits in ~8 MiB of VMEM we use a single Cout tile so the weight
    stays resident for the entire grid.  tm is capped so the estimated VMEM footprint
    (including Horner intermediates + act scratch) stays under ~40 MiB (v7x has 64 MiB)."""
    cout128 = _round_up(cout, 128)
    if cin * cout128 * 2 <= 8 * 1024 * 1024:
        tn = cout128                        # single Cout tile: weight fetched exactly once
    else:
        tn = min(512, cout128)              # >= 256 fills the 256-wide MXU on v6e/v7x

    def vmem_estimate(tm):
        return (2 * tm * cin * x_itemsize   # x tiles (double-buffered)
                + 2 * 16 * cin * 4          # merged coeff table
                + 2 * cin * tn * 2          # bf16 weight tiles
                + 2 * 8 * tn * 4            # bias tiles (sublane-padded)
                + 2 * tm * tn * x_itemsize  # out tiles
                + tm * cin * 2              # persistent bf16 act scratch
                + 6 * tm * cin * 4)         # live f32 Horner intermediates (x, p, s, q, act)

    tm = min(64, _round_up(m_rows, 8))
    for cand in (256, 128, 64):             # 256 is safe on v7x; v6e/v5e (128 MiB) could take 512
        tm = min(cand, _round_up(m_rows, 8))
        if vmem_estimate(tm) <= 40 * 1024 * 1024:
            break
    return tm, tn


@functools.partial(jax.jit, static_argnames=("tm", "tn", "cout", "bf16_horner"))
def groupkan_linear(x, coef, w_t, bias2d, *, tm, tn, cout, bf16_horner=False):
    """x: (..., Cin) (2-D or 3-D, like the PyTorch module); params from
    prepare_groupkan_params.  Returns (..., cout)."""
    lead = x.shape[:-1]
    cin = x.shape[-1]
    cout_pad = w_t.shape[1]
    m = 1
    for d in lead:
        m *= d
    m_pad = _round_up(m, tm)

    x2d = x.reshape(m, cin)
    if m_pad != m:
        x2d = jnp.pad(x2d, ((0, m_pad - m), (0, 0)))

    n_m = m_pad // tm
    n_cout = cout_pad // tn

    # VMEM budget: BlockSpec tiles + persistent act scratch + Horner intermediates,
    # clamped below v7x's 64 MiB physical VMEM.
    x_item = jnp.dtype(x.dtype).itemsize
    vmem_usage = (2 * tm * cin * x_item + 2 * 16 * cin * 4 + 2 * cin * tn * 2
                  + 2 * 8 * tn * 4 + 2 * tm * tn * x_item
                  + tm * cin * 2 + 6 * tm * cin * 4)
    vmem_limit = int(min(48 * 1024 * 1024, max(16 * 1024 * 1024, 2 * vmem_usage)))

    kernel = functools.partial(
        _groupkan_kernel,
        act_dtype=jnp.bfloat16 if bf16_horner else jnp.float32)

    out2d = pl.pallas_call(
        kernel,
        out_shape=jax.ShapeDtypeStruct((m_pad, cout_pad), x.dtype),
        grid_spec=pltpu.PrefetchScalarGridSpec(
            num_scalar_prefetch=0,
            # M tiles OUTER ("parallel": v7x's two TensorCores split rows, each streaming
            # only its half of x), Cout tiles INNER ("arbitrary": sequential, so the act
            # scratch written at j == 0 is valid for every j of that M tile).
            grid=(n_m, n_cout),
            in_specs=[
                pl.BlockSpec((tm, cin), lambda i, j: (i, 0)),    # x: DMA'd once per M tile
                pl.BlockSpec((16, cin), lambda i, j: (0, 0)),    # merged coeffs: DMA'd once
                pl.BlockSpec((cin, tn), lambda i, j: (0, j)),    # weight (bf16, lane-dense)
                pl.BlockSpec((1, tn), lambda i, j: (0, j)),      # bias
            ],
            out_specs=pl.BlockSpec((tm, tn), lambda i, j: (i, j)),
            scratch_shapes=[pltpu.VMEM((tm, cin), jnp.bfloat16)],  # cached activation
        ),
        compiler_params=pltpu.CompilerParams(
            dimension_semantics=("parallel", "arbitrary"),
            vmem_limit_bytes=vmem_limit),
    )(x2d, coef, w_t, bias2d)

    return out2d[:m, :cout].reshape(*lead, cout)


def _reference(x, num_g, den_g, weight, bias):
    """Pure-JAX f32 reference of the same semantics (for correctness check)."""
    B, N, Cin = x.shape
    G = num_g.shape[0]
    gs = Cin // G
    xg = x.reshape(B, N, G, gs)
    powers = jnp.stack([xg ** k for k in range(6)], axis=-1)        # (B,N,G,gs,6)
    p = jnp.einsum("bngdk,gk->bngd", powers, num_g)
    s = jnp.einsum("bngdk,gk->bngd", powers[..., 1:5], den_g)
    act = (p / (1.0 + jnp.abs(s))).reshape(B, N, Cin)
    return act @ weight.T + bias


if __name__ == "__main__":
    # Small, module-consistent shapes: tokens (B, N, C_in), num_groups=8.
    B, N, Cin, Cout, G = 2, 16, 32, 64, 8

    key = jax.random.PRNGKey(0)
    kx, kw, kb, kn, kd = jax.random.split(key, 5)

    x = jax.random.normal(kx, (B, N, Cin), dtype=jnp.float32)

    # Deterministic "gelu-fit"-style rational coefficients (numerator shared across
    # groups as in KAT_Group init, denominator per-group with small deterministic jitter).
    num_base = jnp.array([-0.0034, 0.5, 0.44, 0.094, -0.0063, -0.0006], dtype=jnp.float32)
    den_base = jnp.array([0.0, 0.17, 0.0, 0.017], dtype=jnp.float32)
    num_g = jnp.tile(num_base[None, :], (G, 1)) + 0.01 * jax.random.normal(kn, (G, 6))
    den_g = jnp.tile(den_base[None, :], (G, 1)) + 0.01 * jax.random.normal(kd, (G, 4))

    # nn.Linear(in_features=Cin, out_features=Cout, bias=True) parameters.
    weight = jax.random.normal(kw, (Cout, Cin), dtype=jnp.float32) * (1.0 / jnp.sqrt(Cin))
    bias = jax.random.normal(kb, (Cout,), dtype=jnp.float32) * 0.01

    M = B * N
    tm, tn = pick_tiles(M, Cin, Cout, x_itemsize=jnp.dtype(x.dtype).itemsize)

    params = prepare_groupkan_params(num_g, den_g, weight, bias, tn=tn)   # one-time prep
    # bf16_horner=False keeps the elementwise rational in f32 for accuracy; set True on
    # v6e/v7x when the looser numerics are acceptable (2x VALU throughput on the bound unit).
    out = groupkan_linear(x, *params, tm=tm, tn=tn, cout=Cout, bf16_horner=False)
    out = jax.block_until_ready(out)

    ref = _reference(x, num_g, den_g, weight, bias)
    assert out.shape == (B, N, Cout)
    # bf16 MXU inputs + approx reciprocal -> tolerance looser than a pure-f32 path.
    assert jnp.allclose(out, ref, atol=2e-2, rtol=2e-2), "mismatch vs reference"

    # TODO(synk): use_conv=True (1x1 Conv2d on NCHW) path not exercised; it is the same
    # matmul over flattened spatial positions and would reuse this kernel after NCHW->NHWC.
    print("KERNEL_OK")
</pallas_src>

<mosaic_0001>
module attributes {stable_mosaic.version = 11 : i64} {
  func.func @_groupkan_kernel(%arg0: i32, %arg1: i32, %arg2: memref<32x32xf32, #tpu.memory_space<vmem>>, %arg3: memref<16x32xf32, #tpu.memory_space<vmem>>, %arg4: memref<32x128xbf16, #tpu.memory_space<vmem>>, %arg5: memref<1x128xf32, #tpu.memory_space<vmem>>, %arg6: memref<32x128xf32, #tpu.memory_space<vmem>>, %arg7: memref<32x32xbf16, #tpu.memory_space<vmem>>) attributes {dimension_semantics = [#tpu.dimension_semantics<parallel>, #tpu.dimension_semantics<arbitrary>], iteration_bounds = array<i64: 1, 1>, scalar_prefetch = 0 : i64, scratch_operands = 1 : i64, tpu.core_type = #tpu.core_type<tc>, window_params = [{transform_indices = @transform_0, window_bounds = array<i64: 32, 32>}, {pipeline_mode = #tpu.pipeline_mode<synchronous>, transform_indices = @transform_1, window_bounds = array<i64: 16, 32>}, {transform_indices = @transform_2, window_bounds = array<i64: 32, 128>}, {transform_indices = @transform_3, window_bounds = array<i64: 1, 128>}, {transform_indices = @transform_4, window_bounds = array<i64: 32, 128>}]} {
    %c0_i32 = arith.constant 0 : i32
    %0 = arith.cmpi eq, %arg1, %c0_i32 : i32
    %1 = arith.extui %0 : i1 to i32
    %c0_i32_0 = arith.constant 0 : i32
    %2 = arith.cmpi ne, %1, %c0_i32_0 : i32
    scf.if %2 {
      %c0_8 = arith.constant 0 : index
      %c0_9 = arith.constant 0 : index
      %10 = vector.load %arg2[%c0_8, %c0_9] : memref<32x32xf32, #tpu.memory_space<vmem>>, vector<32x32xf32>
      %c0_10 = arith.constant 0 : index
      %c0_11 = arith.constant 0 : index
      %11 = vector.load %arg3[%c0_10, %c0_11] : memref<16x32xf32, #tpu.memory_space<vmem>>, vector<16x32xf32>
      %12 = vector.extract_strided_slice %11 {offsets = [5, 0], sizes = [1, 32], strides = [1, 1]} : vector<16x32xf32> to vector<1x32xf32>
      %13 = vector.broadcast %12 : vector<1x32xf32> to vector<32x32xf32>
      %14 = arith.mulf %13, %10 : vector<32x32xf32>
      %15 = vector.extract_strided_slice %11 {offsets = [4, 0], sizes = [1, 32], strides = [1, 1]} : vector<16x32xf32> to vector<1x32xf32>
      %16 = vector.broadcast %15 : vector<1x32xf32> to vector<32x32xf32>
      %17 = arith.addf %14, %16 : vector<32x32xf32>
      %18 = arith.mulf %17, %10 : vector<32x32xf32>
      %19 = vector.extract_strided_slice %11 {offsets = [3, 0], sizes = [1, 32], strides = [1, 1]} : vector<16x32xf32> to vector<1x32xf32>
      %20 = vector.broadcast %19 : vector<1x32xf32> to vector<32x32xf32>
      %21 = arith.addf %18, %20 : vector<32x32xf32>
      %22 = arith.mulf %21, %10 : vector<32x32xf32>
      %23 = vector.extract_strided_slice %11 {offsets = [2, 0], sizes = [1, 32], strides = [1, 1]} : vector<16x32xf32> to vector<1x32xf32>
      %24 = vector.broadcast %23 : vector<1x32xf32> to vector<32x32xf32>
      %25 = arith.addf %22, %24 : vector<32x32xf32>
      %26 = arith.mulf %25, %10 : vector<32x32xf32>
      %27 = vector.extract_strided_slice %11 {offsets = [1, 0], sizes = [1, 32], strides = [1, 1]} : vector<16x32xf32> to vector<1x32xf32>
      %28 = vector.broadcast %27 : vector<1x32xf32> to vector<32x32xf32>
      %29 = arith.addf %26, %28 : vector<32x32xf32>
      %30 = arith.mulf %29, %10 : vector<32x32xf32>
      %31 = vector.extract_strided_slice %11 {offsets = [0, 0], sizes = [1, 32], strides = [1, 1]} : vector<16x32xf32> to vector<1x32xf32>
      %32 = vector.broadcast %31 : vector<1x32xf32> to vector<32x32xf32>
      %33 = arith.addf %30, %32 : vector<32x32xf32>
      %34 = vector.extract_strided_slice %11 {offsets = [11, 0], sizes = [1, 32], strides = [1, 1]} : vector<16x32xf32> to vector<1x32xf32>
      %35 = vector.broadcast %34 : vector<1x32xf32> to vector<32x32xf32>
      %36 = arith.mulf %35, %10 : vector<32x32xf32>
      %37 = vector.extract_strided_slice %11 {offsets = [10, 0], sizes = [1, 32], strides = [1, 1]} : vector<16x32xf32> to vector<1x32xf32>
      %38 = vector.broadcast %37 : vector<1x32xf32> to vector<32x32xf32>
      %39 = arith.addf %36, %38 : vector<32x32xf32>
      %40 = arith.mulf %39, %10 : vector<32x32xf32>
      %41 = vector.extract_strided_slice %11 {offsets = [9, 0], sizes = [1, 32], strides = [1, 1]} : vector<16x32xf32> to vector<1x32xf32>
      %42 = vector.broadcast %41 : vector<1x32xf32> to vector<32x32xf32>
      %43 = arith.addf %40, %42 : vector<32x32xf32>
      %44 = arith.mulf %43, %10 : vector<32x32xf32>
      %45 = vector.extract_strided_slice %11 {offsets = [8, 0], sizes = [1, 32], strides = [1, 1]} : vector<16x32xf32> to vector<1x32xf32>
      %46 = vector.broadcast %45 : vector<1x32xf32> to vector<32x32xf32>
      %47 = arith.addf %44, %46 : vector<32x32xf32>
      %48 = arith.mulf %47, %10 : vector<32x32xf32>
      %49 = math.absf %48 : vector<32x32xf32>
      %cst_12 = arith.constant 1.000000e+00 : f32
      %50 = vector.broadcast %cst_12 : f32 to vector<32x32xf32>
      %51 = arith.addf %50, %49 : vector<32x32xf32>
      %52 = tpu.reciprocal %51 {approx = true} : vector<32x32xf32> -> vector<32x32xf32>
      %53 = arith.mulf %33, %52 : vector<32x32xf32>
      %54 = arith.truncf %53 : vector<32x32xf32> to vector<32x32xbf16>
      %c0_13 = arith.constant 0 : index
      %c0_14 = arith.constant 0 : index
      %55 = vector.load %arg7[%c0_13, %c0_14] : memref<32x32xbf16, #tpu.memory_space<vmem>>, vector<32x32xbf16>
      tpu.vector_store %arg7[%c0_13, %c0_14], %54 {strides = array<i32>} : memref<32x32xbf16, #tpu.memory_space<vmem>>, vector<32x32xbf16>,
    } else {
    }
    %c0 = arith.constant 0 : index
    %c0_1 = arith.constant 0 : index
    %3 = vector.load %arg7[%c0, %c0_1] : memref<32x32xbf16, #tpu.memory_space<vmem>>, vector<32x32xbf16>
    %c0_2 = arith.constant 0 : index
    %c0_3 = arith.constant 0 : index
    %4 = vector.load %arg4[%c0_2, %c0_3] : memref<32x128xbf16, #tpu.memory_space<vmem>>, vector<32x128xbf16>
    %cst = arith.constant dense<0.000000e+00> : vector<32x128xf32>
    %5 = tpu.matmul %3, %4, %cst {dimension_numbers = #tpu.dot_dimension_numbers<[1], [0], [0], [1], [0, 0, 1, 1], [], []>} : vector<32x32xbf16>, vector<32x128xbf16>, vector<32x128xf32> -> vector<32x128xf32>
    %c0_4 = arith.constant 0 : index
    %c0_5 = arith.constant 0 : index
    %6 = vector.load %arg5[%c0_4, %c0_5] : memref<1x128xf32, #tpu.memory_space<vmem>>, vector<1x128xf32>
    %7 = vector.broadcast %6 : vector<1x128xf32> to vector<32x128xf32>
    %8 = arith.addf %5, %7 : vector<32x128xf32>
    %c0_6 = arith.constant 0 : index
    %c0_7 = arith.constant 0 : index
    %9 = vector.load %arg6[%c0_6, %c0_7] : memref<32x128xf32, #tpu.memory_space<vmem>>, vector<32x128xf32>
    tpu.vector_store %arg6[%c0_6, %c0_7], %8 {strides = array<i32>} : memref<32x128xf32, #tpu.memory_space<vmem>>, vector<32x128xf32>,
    return
  }
  func.func @transform_0(%arg0: i32, %arg1: i32) -> (i32, i32) {
    %c0_i32 = arith.constant 0 : i32
    %c0_i32_0 = arith.constant 0 : i32
    return %arg0, %c0_i32 : i32, i32
  }
  func.func @transform_1(%arg0: i32, %arg1: i32) -> (i32, i32) {
    %c0_i32 = arith.constant 0 : i32
    %c0_i32_0 = arith.constant 0 : i32
    %c0_i32_1 = arith.constant 0 : i32
    return %c0_i32, %c0_i32_0 : i32, i32
  }
  func.func @transform_2(%arg0: i32, %arg1: i32) -> (i32, i32) {
    %c0_i32 = arith.constant 0 : i32
    %c0_i32_0 = arith.constant 0 : i32
    return %c0_i32, %arg1 : i32, i32
  }
  func.func @transform_3(%arg0: i32, %arg1: i32) -> (i32, i32) {
    %c0_i32 = arith.constant 0 : i32
    %c0_i32_0 = arith.constant 0 : i32
    return %c0_i32, %arg1 : i32, i32
  }
  func.func @transform_4(%arg0: i32, %arg1: i32) -> (i32, i32) {
    %c0_i32 = arith.constant 0 : i32
    return %arg0, %arg1 : i32, i32
  }
}

</mosaic_0001>

<llo_original>
// kernel: groupkan_linear.1
$region0: #{groupkan_linear.1}
  #allocation0 [shape = 'u32[]', space=smem, size = 0x4, offset = 0x4, fixed_abs, tag = 'smem constant byte address 0x4 - core index']
  #allocation1 [shape = 'u32[72,128]{1,0:T(1,128)}', space=vmem, size = 0x9000, scoped, tag = 'internal scratch']
  #allocation2 [shape = 'bf16[32,32]{1,0:T(8,128)(2,1)}', space=vmem, size = 0x2000, scoped, tag = 'scratch operand']
  %s0 = inlined_call_operand.hbm [shape: f32[32,32], index: 0, kind: input, shape index: {}]
  %s1 = inlined_call_operand.hbm [shape: f32[16,32], index: 1, kind: input, shape index: {}]
  %s2 = inlined_call_operand.hbm [shape: bf16[32,128], index: 2, kind: input, shape index: {}]
  %s3 = inlined_call_operand.vmem [shape: f32[1,128], index: 3, kind: input, shape index: {}]
  %s4 = inlined_call_operand.hbm [shape: f32[32,128], index: 4, kind: output, shape index: {}]
  %s5 = sld [smem:[#allocation0]]
  $region42: #{groupkan_linear.1} parent=0
    _
  %s7 = ssub.s32 1, %s5
  %s8 = scalar_select 0, %s7, %s5
  $region1: #{groupkan_linear.1} parent=0
    #allocation3 [shape = 'u8[16384]{0}', space=vmem, size = 0x4000, scoped, tag = 'input window, operand 0, single buffered']
    #allocation4 [shape = 's32[1]{0}', space=sflag, size = 0x4, scoped, tag = 'scoped memory for groupkan_linear.1']
    #allocation5 [shape = 's32[1]{0}', space=sflag, size = 0x4, scoped, tag = 'scoped memory for groupkan_linear.1']
    #allocation6 [shape = 'u8[8192]{0}', space=vmem, size = 0x2000, scoped, tag = 'input window, operand 1, single buffered']
    #allocation7 [shape = 's32[1]{0}', space=sflag, size = 0x4, scoped, tag = 'scoped memory for groupkan_linear.1']
    #allocation8 [shape = 'u8[8192]{0}', space=vmem, size = 0x2000, scoped, tag = 'input window, operand 2, single buffered']
    #allocation9 [shape = 'u8[16384]{0}', space=vmem, size = 0x4000, scoped, tag = 'output window, operand 0, single buffered']
    %9 = vsyncpa [#allocation4], 0
    %10 = vsyncpa [#allocation7], 0
    %11 = vsyncpa [#allocation5], 0
    // Predicated region
    $region2: #{groupkan_linear.1} parent=1 // pred_check
      _
    $region3: #{groupkan_linear.1} parent=1 // pred_check_branch
      %13 = sbr.rel (0) target = $region5
    $region4: #{groupkan_linear.1} parent=1 // pred_region
      %15 = vsyncadd [#allocation4], 0
      %s16 = sshll.u32 %s0, 4
      %s17 = int_to_ptr.hbm [resolvable:$true] %s16
      %s18 = sshll.u32 [#allocation3], 4
      %s19 = int_to_ptr.vmem [resolvable:$true] %s18
      %24 = dma.hbm_to_vmem [thread:$0]  %s17, 512, %s19, [#allocation4], 128, 128, 8
    $region5: #{groupkan_linear.1} parent=1 // pred_fallthru
      _
    // Predicated region
    $region6: #{groupkan_linear.1} parent=1 // pred_check
      _
    $region7: #{groupkan_linear.1} parent=1 // pred_check_branch
      %26 = sbr.rel (0) target = $region9
    $region8: #{groupkan_linear.1} parent=1 // pred_region
      %28 = vsyncadd [#allocation7], 0
      %s29 = sshll.u32 %s1, 4
      %s30 = int_to_ptr.hbm [resolvable:$true] %s29
      %s31 = sshll.u32 [#allocation6], 4
      %s32 = int_to_ptr.vmem [resolvable:$true] %s31
      %37 = dma.hbm_to_vmem [thread:$0]  %s30, 256, %s32, [#allocation7], 128, 128, 8
    $region9: #{groupkan_linear.1} parent=1 // pred_fallthru
      _
    // Predicated region
    $region10: #{groupkan_linear.1} parent=1 // pred_check
      _
    $region11: #{groupkan_linear.1} parent=1 // pred_check_branch
      %39 = sbr.rel (0) target = $region13
    $region12: #{groupkan_linear.1} parent=1 // pred_region
      %41 = vsyncadd [#allocation7], 0
      %s42 = sshll.u32 %s2, 4
      %s43 = int_to_ptr.hbm [resolvable:$true] %s42
      %s44 = sshll.u32 [#allocation8], 4
      %s45 = int_to_ptr.vmem [resolvable:$true] %s44
      %50 = dma.hbm_to_vmem [thread:$0]  %s43, 256, %s45, [#allocation7], 64, 64, 4
    $region13: #{groupkan_linear.1} parent=1 // pred_fallthru
      _
    // Predicated region
    $region14: #{groupkan_linear.1} parent=1 // pred_check
      _
    $region15: #{groupkan_linear.1} parent=1 // pred_check_branch
      %52 = sbr.rel (0) target = $region17
    $region16: #{groupkan_linear.1} parent=1 // pred_region
      _
    $region17: #{groupkan_linear.1} parent=1 // pred_fallthru
      _
    // Predicated region
    $region18: #{groupkan_linear.1} parent=1 // pred_check
      _
    $region19: #{groupkan_linear.1} parent=1 // pred_check_branch
      %54 = sbr.rel (0) target = $region21
    $region20: #{groupkan_linear.1} parent=1 // pred_region
      %56 = dma.done [#allocation4], 512
    $region21: #{groupkan_linear.1} parent=1 // pred_fallthru
      _
    // Predicated region
    $region22: #{groupkan_linear.1} parent=1 // pred_check
      _
    $region23: #{groupkan_linear.1} parent=1 // pred_check_branch
      %58 = sbr.rel (0) target = $region25
    $region24: #{groupkan_linear.1} parent=1 // pred_region
      %60 = dma.done [#allocation7], 256
    $region25: #{groupkan_linear.1} parent=1 // pred_fallthru
      _
    // Predicated region
    $region26: #{groupkan_linear.1} parent=1 // pred_check
      _
    $region27: #{groupkan_linear.1} parent=1 // pred_check_branch
      %62 = sbr.rel (0) target = $region29
    $region28: #{groupkan_linear.1} parent=1 // pred_region
      %64 = dma.done [#allocation7], 256
    $region29: #{groupkan_linear.1} parent=1 // pred_fallthru
      _
    %p66 = scmp.eq.s32.totalorder 0, 0
    // Predicated region
    $region30: #{groupkan_linear.1} parent=1 // pred_check
      %p67 = pneg %p66
    $region31: #{groupkan_linear.1} parent=1 // pred_check_branch
      %69 = sbr.rel (%p67) target = $region33
    $region32: #{groupkan_linear.1} parent=1 // pred_region
      %v70 = vld [vmem:[#allocation3] sm:$0xff]
      %v71 = vld [vmem:[#allocation3 + $0x8] sm:$0xff]
      %v72 = vld [vmem:[#allocation3 + $0x10] sm:$0xff]
      %v73 = vld [vmem:[#allocation3 + $0x18] sm:$0xff]
      %v74 = vld [vmem:[#allocation6] sm:$0xff]
      %v75 = vld [vmem:[#allocation6 + $0x8] sm:$0xff]
      %v76 = vperm.slane %v74, 5
      %v77 = vmul.f32 %v76, %v70
      %v78 = vmul.f32 %v76, %v71
      %v79 = vmul.f32 %v76, %v72
      %v80 = vmul.f32 %v76, %v73
      %v81 = vperm.slane %v74, 4
      %v82 = vadd.f32 %v77, %v81
      %v83 = vadd.f32 %v78, %v81
      %v84 = vadd.f32 %v79, %v81
      %v85 = vadd.f32 %v80, %v81
      %v86 = vmul.f32 %v82, %v70
      %v87 = vmul.f32 %v83, %v71
      %v88 = vmul.f32 %v84, %v72
      %v89 = vmul.f32 %v85, %v73
      %v90 = vperm.slane %v74, 3
      %v91 = vadd.f32 %v86, %v90
      %v92 = vadd.f32 %v87, %v90
      %v93 = vadd.f32 %v88, %v90
      %v94 = vadd.f32 %v89, %v90
      %v95 = vmul.f32 %v91, %v70
      %v96 = vmul.f32 %v92, %v71
      %v97 = vmul.f32 %v93, %v72
      %v98 = vmul.f32 %v94, %v73
      %v99 = vperm.slane %v74, 2
      %v100 = vadd.f32 %v95, %v99
      %v101 = vadd.f32 %v96, %v99
      %v102 = vadd.f32 %v97, %v99
      %v103 = vadd.f32 %v98, %v99
      %v104 = vmul.f32 %v100, %v70
      %v105 = vmul.f32 %v101, %v71
      %v106 = vmul.f32 %v102, %v72
      %v107 = vmul.f32 %v103, %v73
      %v108 = vperm.slane %v74, 1
      %v109 = vadd.f32 %v104, %v108
      %v110 = vadd.f32 %v105, %v108
      %v111 = vadd.f32 %v106, %v108
      %v112 = vadd.f32 %v107, %v108
      %v113 = vmul.f32 %v109, %v70
      %v114 = vmul.f32 %v110, %v71
      %v115 = vmul.f32 %v111, %v72
      %v116 = vmul.f32 %v112, %v73
      %v117 = vperm.slane %v74, 0
      %v118 = vadd.f32 %v113, %v117
      %v119 = vadd.f32 %v114, %v117
      %v120 = vadd.f32 %v115, %v117
      %v121 = vadd.f32 %v116, %v117
      %v122 = vperm.slane %v75, 3
      %v123 = vmul.f32 %v122, %v70
      %v124 = vmul.f32 %v122, %v71
      %v125 = vmul.f32 %v122, %v72
      %v126 = vmul.f32 %v122, %v73
      %v127 = vperm.slane %v75, 2
      %v128 = vadd.f32 %v123, %v127
      %v129 = vadd.f32 %v124, %v127
      %v130 = vadd.f32 %v125, %v127
      %v131 = vadd.f32 %v126, %v127
      %v132 = vmul.f32 %v128, %v70
      %v133 = vmul.f32 %v129, %v71
      %v134 = vmul.f32 %v130, %v72
      %v135 = vmul.f32 %v131, %v73
      %v136 = vperm.slane %v75, 1
      %v137 = vadd.f32 %v132, %v136
      %v138 = vadd.f32 %v133, %v136
      %v139 = vadd.f32 %v134, %v136
      %v140 = vadd.f32 %v135, %v136
      %v141 = vmul.f32 %v137, %v70
      %v142 = vmul.f32 %v138, %v71
      %v143 = vmul.f32 %v139, %v72
      %v144 = vmul.f32 %v140, %v73
      %v145 = vperm.slane %v75, 0
      %v146 = vadd.f32 %v141, %v145
      %v147 = vadd.f32 %v142, %v145
      %v148 = vadd.f32 %v143, %v145
      %v149 = vadd.f32 %v144, %v145
      %v150 = vmul.f32 %v146, %v70
      %v151 = vmul.f32 %v147, %v71
      %v152 = vmul.f32 %v148, %v72
      %v153 = vmul.f32 %v149, %v73
      %v154 = vand.u32 2147483647, %v150
      %v155 = vand.u32 2147483647, %v151
      %v156 = vand.u32 2147483647, %v152
      %v157 = vand.u32 2147483647, %v153
      %v158 = vadd.f32 %v154, 1.0
      %v159 = vadd.f32 %v155, 1.0
      %v160 = vadd.f32 %v156, 1.0
      %v161 = vadd.f32 %v157, 1.0
      %v162 = vrcp.pop %v158
      %v163 = vrcp.pop %v159
      %v164 = vrcp.pop %v160
      %v165 = vrcp.pop %v161
      %v166 = vmul.f32 %v118, %v162
      %v167 = vmul.f32 %v119, %v163
      %v168 = vmul.f32 %v120, %v164
      %v169 = vmul.f32 %v121, %v165
      %v170 = vpack.c.bf16 %v166, %v166
      %v171 = vpack.c.bf16 %v167, %v167
      %v172 = vpack.c.bf16 %v168, %v168
      %v173 = vpack.c.bf16 %v169, %v169
      %vm174 = vcmask 257024
      %175 = vst.msk [vmem:[#allocation2] sm:$0xf] %vm174, %v170
      %176 = vst.msk [vmem:[#allocation2 + $0x4] sm:$0xf] %vm174, %v171
      %177 = vst.msk [vmem:[#allocation2 + $0x8] sm:$0xf] %vm174, %v172
      %178 = vst.msk [vmem:[#allocation2 + $0xc] sm:$0xf] %vm174, %v173
    $region33: #{groupkan_linear.1} parent=1 // pred_fallthru
      _
    %v179 = vld [vmem:[#allocation2] sm:$0xf]
    %v180 = vld [vmem:[#allocation2 + $0x4] sm:$0xf]
    %v181 = vld [vmem:[#allocation2 + $0x8] sm:$0xf]
    %v182 = vld [vmem:[#allocation2 + $0xc] sm:$0xf]
    %v183 = vld [vmem:[#allocation8] sm:$0xf]
    %v184 = vld [vmem:[#allocation8 + $0x4] sm:$0xf]
    %v185 = vld [vmem:[#allocation8 + $0x8] sm:$0xf]
    %v186 = vld [vmem:[#allocation8 + $0xc] sm:$0xf]
    %v187 = vld [vmem:[%s3] sm:$0x1]
    %v189 = vperm.slane %v187, 0
    %v195 = vunpack.c.l.b16 %v179
    %v196 = vunpack.c.l.b16 %v180
    %v197 = vunpack.c.l.b16 %v181
    %v198 = vunpack.c.l.b16 %v182
    %v199 = vpack.c.b16 %v196, %v195
    %v200 = vpack.c.b16 %v198, %v197
    %v205 = vunpack.c.l.b16 %v183
    %v206 = vunpack.c.l.b16 %v184
    %v207 = vunpack.c.l.b16 %v185
    %v208 = vunpack.c.l.b16 %v186
    %v209 = vpack.c.b16 %v206, %v205
    %v210 = vpack.c.b16 %v208, %v207
    %vm213 = vcmask 261120
    %v215 = vsel %vm213, %v199, 0
    %v218 = vsel %vm213, %v200, 0
    %220 = vmatpush.bf16.msra.mxu0 0
    %221 = vmatpush.bf16.msra.mxu0 0
    %222 = vmatpush.bf16.msra.mxu0 0
    %223 = vmatpush.bf16.msra.mxu0 0
    %224 = vmatpush.bf16.msra.mxu0 0
    %225 = vmatpush.bf16.msra.mxu0 0
    %226 = vmatpush.bf16.msra.mxu0 %v210
    %227 = vmatpush.bf16.msra.mxu0 %v209
    %228 = vmatmul.bf16.gmra.mxu0 %v215
    %v229 = vpop.f32.mrf.mxu0
    %v230 = vadd.f32 %v189, %v229
    %v231 = vpop.f32.mrf.mxu0
    %v232 = vadd.f32 %v189, %v231
    %233 = vmatmul.bf16.gmra.mxu0 %v218
    %v234 = vpop.f32.mrf.mxu0
    %v235 = vadd.f32 %v189, %v234
    %v236 = vpop.f32.mrf.mxu0
    %v237 = vadd.f32 %v189, %v236
    %238 = vdwg.mxu0
    %239 = vst [vmem:[#allocation9] sm:$0xff] %v230
    %240 = vst [vmem:[#allocation9 + $0x8] sm:$0xff] %v232
    %241 = vst [vmem:[#allocation9 + $0x10] sm:$0xff] %v235
    %242 = vst [vmem:[#allocation9 + $0x18] sm:$0xff] %v237
    // Predicated region
    $region34: #{groupkan_linear.1} parent=1 // pred_check
      _
    $region35: #{groupkan_linear.1} parent=1 // pred_check_branch
      %244 = sbr.rel (0) target = $region37
    $region36: #{groupkan_linear.1} parent=1 // pred_region
      %246 = vsyncadd [#allocation5], 0
      %s247 = sshll.u32 [#allocation9], 4
      %s248 = int_to_ptr.vmem [resolvable:$true] %s247
      %s249 = sshll.u32 %s4, 4
      %s250 = int_to_ptr.hbm [resolvable:$true] %s249
      %255 = dma.vmem_to_hbm [thread:$0]  %s248, 512, %s250, [#allocation5], 128, 128, 8
    $region37: #{groupkan_linear.1} parent=1 // pred_fallthru
      _
    // Predicated region
    $region38: #{groupkan_linear.1} parent=1 // pred_check
      _
    $region39: #{groupkan_linear.1} parent=1 // pred_check_branch
      %257 = sbr.rel (0) target = $region41
    $region40: #{groupkan_linear.1} parent=1 // pred_region
      %259 = dma.done [#allocation5], 512
    $region41: #{groupkan_linear.1} parent=1 // pred_fallthru
      _
    %260 = vsyncpa [#allocation4], 1
    %261 = vsyncpa [#allocation7], 1
    %262 = vsyncpa [#allocation5], 1

</llo_original>
